<compile_context>
chip_gen: v7x
topology: tpu7x:2x2x1
jax: 0.10.0
libtpu: 0.0.40
codegen_flags: <defaults>
</compile_context>

<pallas_src>
import functools
import math
from typing import NamedTuple, Union

import jax
import jax.numpy as jnp
from jax import lax
from jax.experimental import pallas as pl
from jax.experimental.pallas import tpu as pltpu

M_MARGIN = 4            # self.m = 4  -> mlambda[4](c) = 8c^4 - 8c^2 + 1
PI = 3.14159265         # the constant used by the PyTorch code (not math.pi)

# k = floor(m * theta / PI) rewritten as threshold compares on cos_theta:
#   k >= j  <=>  theta >= j*PI/m  <=>  cos_theta <= cos(j*PI/m)
# (arccos is monotone decreasing).  phi is continuous across bin edges, so this
# is numerically robust and avoids arccos/floor on the VPU entirely.
_K_THRESHOLDS = tuple(float(math.cos(j * PI / M_MARGIN))
                      for j in range(1, M_MARGIN + 1))


def _round_up(v, m):
    return (v + m - 1) // m * m


def _angle_linear_kernel(x_ref, w_ref, cinv_ref, xlen_ref, xinv_ref,
                         cos_ref, phi_ref, *, matmul_dtype):
    # MXU matmul.  bf16 inputs + f32 accumulation by default (full MXU rate);
    # all epilogue math stays in f32 (v5e VPU/EUP have no bf16 path).
    if matmul_dtype is not None:
        x = x_ref[...].astype(matmul_dtype)
        w = w_ref[...].astype(matmul_dtype)
    else:
        x = x_ref[...].astype(jnp.float32)
        w = w_ref[...].astype(jnp.float32)
    ct = jnp.dot(x, w, preferred_element_type=jnp.float32)       # (tm, tn)

    # cos_theta = (x @ ww) / xlen / wlen  -> single fused multiply per element.
    # Forward renorm algebra: (x @ ww)/wlen == (x @ w)/||w_col|| for any
    # positive per-column rescale, so ww is never materialized.
    ct = ct * (xinv_ref[...] * cinv_ref[...])
    ct = jnp.clip(ct, -1.0, 1.0)

    # m = 4:  cos(m*theta) = 8c^4 - 8c^2 + 1
    ct2 = ct * ct
    cos_m_theta = 8.0 * ct2 * (ct2 - 1.0) + 1.0

    # k and (-1)^k via compares / xor parity (no arccos, floor, mod, divide).
    b1 = ct <= _K_THRESHOLDS[0]
    b2 = ct <= _K_THRESHOLDS[1]
    b3 = ct <= _K_THRESHOLDS[2]
    b4 = ct <= _K_THRESHOLDS[3]
    k = (b1.astype(jnp.float32) + b2.astype(jnp.float32)
         + b3.astype(jnp.float32) + b4.astype(jnp.float32))
    k_odd = jnp.logical_xor(jnp.logical_xor(b1, b2), jnp.logical_xor(b3, b4))
    sign = jnp.where(k_odd, jnp.float32(-1.0), jnp.float32(1.0))
    phi_theta = sign * cos_m_theta - 2.0 * k

    xlen = xlen_ref[...]
    cos_ref[...] = (ct * xlen).astype(cos_ref.dtype)
    phi_ref[...] = (phi_theta * xlen).astype(phi_ref.dtype)


class AngleLinearParams(NamedTuple):
    """One-time (init-time) prepared AngleLinear parameters."""
    weight: jax.Array        # (in_f, Np) column-padded to a multiple of tn
    cinv: jax.Array          # (1, Np)   rsqrt of weight column squared norms
    out_features: int        # logical out_features (pre-padding)
    tn: int                  # column tile used for padding


def prepare_angle_linear(weight, *, tn=512):
    """Pad the classifier matrix once and precompute inverse column norms.

    Doing this at parameter-init time avoids a full extra HBM read+write of the
    (in_f, out_f) weight (pad) and a full weight reduction (norms) every call.
    """
    _, out_f = weight.shape
    tn = min(tn, _round_up(out_f, 128))          # lane-dense column tile
    np_cols = _round_up(out_f, tn)
    wp = weight if np_cols == out_f else jnp.pad(
        weight, ((0, 0), (0, np_cols - out_f)))
    w32 = wp.astype(jnp.float32)
    csq = jnp.sum(w32 * w32, axis=0, keepdims=True)          # (1, Np)
    cinv = lax.rsqrt(jnp.maximum(csq, 1e-30))                 # guards padded cols
    return AngleLinearParams(wp, cinv, out_f, tn)


def angle_linear(x, weight: Union[jax.Array, AngleLinearParams], *,
                 tm=256, tn=512, matmul_dtype=jnp.bfloat16):
    """Pallas forward of AngleLinear (phiflag=True, m=4).

    x: (B, in_features).  `weight` is either the raw (in_features, out_features)
    matrix or an `AngleLinearParams` from `prepare_angle_linear` (preferred —
    prepare once at init).  Returns (cos_theta, phi_theta), each
    (B, out_features) float32.
    """
    params = weight if isinstance(weight, AngleLinearParams) else \
        prepare_angle_linear(weight, tn=tn)

    B, in_f = x.shape
    in_w, np_cols = params.weight.shape
    assert in_w == in_f
    out_f = params.out_features
    tn = params.tn

    # Sublane-aligned row tile; rows padded only when B is not tile-aligned.
    tm = min(tm, _round_up(B, 8))
    bp = _round_up(B, tm)

    # Row norms hoisted to the wrapper (tiny (B, in_f) reduction) so the kernel
    # has no cross-grid-step scratch dependency -> both grid axes parallel.
    x32 = x.astype(jnp.float32)
    xsq = jnp.sum(x32 * x32, axis=1, keepdims=True)           # (B, 1)
    xlen = jnp.sqrt(xsq)
    xinv = lax.rsqrt(jnp.maximum(xsq, 1e-30))                  # guards zero rows

    if bp != B:
        x_in = jnp.pad(x, ((0, bp - B), (0, 0)))
        xlen = jnp.pad(xlen, ((0, bp - B), (0, 0)))
        xinv = jnp.pad(xinv, ((0, bp - B), (0, 0)))
    else:
        x_in = x

    # Column (weight) axis OUTERMOST: the weight tile only changes with the
    # outer index, so each weight tile is read from HBM exactly once; the small
    # x / xlen / xinv tiles are the ones re-streamed.
    grid = (np_cols // tn, bp // tm)

    kernel = functools.partial(_angle_linear_kernel, matmul_dtype=matmul_dtype)

    cost = pl.CostEstimate(
        flops=2 * bp * np_cols * in_f,
        transcendentals=0,
        bytes_accessed=4 * (bp * in_f + in_f * np_cols + 2 * bp * np_cols
                            + 2 * bp + np_cols))

    # Per-step double-buffered working set (f32 upper bound); only raise the
    # scoped VMEM limit when tiles actually exceed the 16 MiB default (v5e).
    vmem_est = 2 * 4 * (tm * in_f + in_f * tn + 2 * tm * tn + tn + 2 * tm)
    compiler_kwargs = dict(dimension_semantics=("parallel", "parallel"))
    if vmem_est > (16 << 20):
        compiler_kwargs["vmem_limit_bytes"] = min(
            _round_up(vmem_est + (4 << 20), 1 << 20), 64 << 20)

    cos_p, phi_p = pl.pallas_call(
        kernel,
        out_shape=(jax.ShapeDtypeStruct((bp, np_cols), jnp.float32),
                   jax.ShapeDtypeStruct((bp, np_cols), jnp.float32)),
        grid_spec=pltpu.PrefetchScalarGridSpec(
            num_scalar_prefetch=0,
            grid=grid,
            in_specs=[
                pl.BlockSpec((tm, in_f), lambda j, i: (i, 0)),   # x
                pl.BlockSpec((in_f, tn), lambda j, i: (0, j)),   # weight
                pl.BlockSpec((1, tn), lambda j, i: (0, j)),      # cinv
                pl.BlockSpec((tm, 1), lambda j, i: (i, 0)),      # xlen
                pl.BlockSpec((tm, 1), lambda j, i: (i, 0)),      # 1/xlen
            ],
            out_specs=[
                pl.BlockSpec((tm, tn), lambda j, i: (i, j)),
                pl.BlockSpec((tm, tn), lambda j, i: (i, j)),
            ],
        ),
        compiler_params=pltpu.CompilerParams(**compiler_kwargs),
        cost_estimate=cost,
    )(x_in, params.weight, params.cinv, xlen, xinv)

    return cos_p[:B, :out_f], phi_p[:B, :out_f]


def _reference(x, weight):
    """Pure-JAX reference mirroring the PyTorch forward (phiflag=True, m=4)."""
    col_norm = jnp.sqrt(jnp.sum(weight * weight, axis=0, keepdims=True))
    ww = weight * jnp.where(col_norm > 1e-5, 1e-5 / col_norm, 1.0) * 1e5
    xlen = jnp.sqrt(jnp.sum(x * x, axis=1, keepdims=True))
    wlen = jnp.sqrt(jnp.sum(ww * ww, axis=0, keepdims=True))
    ct = jnp.clip((x @ ww) / xlen / wlen, -1.0, 1.0)
    cos_m = 8 * ct ** 4 - 8 * ct ** 2 + 1
    theta = jnp.arccos(ct)
    k = jnp.floor(M_MARGIN * theta / PI)
    sign = 1.0 - 2.0 * jnp.mod(k, 2.0)
    phi = sign * cos_m - 2 * k
    return ct * xlen, phi * xlen


if __name__ == "__main__":
    key = jax.random.PRNGKey(0)
    kx, kw = jax.random.split(key)

    # Feature vectors the ResNet50Feat backbone would emit (B, feat_dim) and
    # the AngleLinear weight (feat_dim, cls_num).  cls_num=300 with tn=128
    # exercises the padded multi-tile column path; B=16 with tm=8 exercises
    # the multi-tile row path.
    B, feat_dim, cls_num = 16, 64, 300

    x = jax.random.normal(kx, (B, feat_dim), dtype=jnp.float32)
    # AngleLinear.__init__: weight.uniform_(-1, 1).renorm_(2, 1, 1e-5).mul_(1e5)
    w = jax.random.uniform(kw, (feat_dim, cls_num), minval=-1.0, maxval=1.0,
                           dtype=jnp.float32)
    w_col = jnp.sqrt(jnp.sum(w * w, axis=0, keepdims=True))
    w = w * jnp.where(w_col > 1e-5, 1e-5 / w_col, 1.0) * 1e5

    ref_cos, ref_phi = _reference(x, w)

    # (1) f32 MXU path, prepared (init-time) weights, multi-tile grid: exact.
    params = prepare_angle_linear(w, tn=128)
    cos_f32, phi_f32 = angle_linear(x, params, tm=8, matmul_dtype=None)
    jax.block_until_ready((cos_f32, phi_f32))
    assert cos_f32.shape == (B, cls_num) and phi_f32.shape == (B, cls_num)
    assert jnp.allclose(cos_f32, ref_cos, atol=1e-4, rtol=1e-4)
    assert jnp.allclose(phi_f32, ref_phi, atol=1e-4, rtol=1e-4)

    # (2) default bf16 MXU path (raw weight, default tiles): relaxed tolerance
    #     (bf16 inputs, f32 accumulation).
    cos_bf, phi_bf = angle_linear(x, w)
    jax.block_until_ready((cos_bf, phi_bf))
    assert cos_bf.shape == (B, cls_num) and phi_bf.shape == (B, cls_num)
    assert jnp.allclose(cos_bf, ref_cos, atol=0.5, rtol=0.05)
    assert jnp.allclose(phi_bf, ref_phi, atol=0.5, rtol=0.05)

    print("KERNEL_OK")
</pallas_src>

<mosaic_0001>
module attributes {stable_mosaic.version = 11 : i64} {
  func.func @_angle_linear_kernel(%arg0: i32, %arg1: i32, %arg2: memref<8x64xf32, #tpu.memory_space<vmem>>, %arg3: memref<64x128xf32, #tpu.memory_space<vmem>>, %arg4: memref<1x128xf32, #tpu.memory_space<vmem>>, %arg5: memref<8x1xf32, #tpu.memory_space<vmem>>, %arg6: memref<8x1xf32, #tpu.memory_space<vmem>>, %arg7: memref<8x128xf32, #tpu.memory_space<vmem>>, %arg8: memref<8x128xf32, #tpu.memory_space<vmem>>) attributes {dimension_semantics = [#tpu.dimension_semantics<parallel>, #tpu.dimension_semantics<parallel>], iteration_bounds = array<i64: 3, 2>, scalar_prefetch = 0 : i64, scratch_operands = 0 : i64, tpu.core_type = #tpu.core_type<tc>, window_params = [{transform_indices = @transform_0, window_bounds = array<i64: 8, 64>}, {transform_indices = @transform_1, window_bounds = array<i64: 64, 128>}, {transform_indices = @transform_2, window_bounds = array<i64: 1, 128>}, {transform_indices = @transform_3, window_bounds = array<i64: 8, 1>}, {transform_indices = @transform_4, window_bounds = array<i64: 8, 1>}, {transform_indices = @transform_5, window_bounds = array<i64: 8, 128>}, {transform_indices = @transform_6, window_bounds = array<i64: 8, 128>}]} {
    %c0 = arith.constant 0 : index
    %c0_0 = arith.constant 0 : index
    %0 = vector.load %arg2[%c0, %c0_0] : memref<8x64xf32, #tpu.memory_space<vmem>>, vector<8x64xf32>
    %c0_1 = arith.constant 0 : index
    %c0_2 = arith.constant 0 : index
    %1 = vector.load %arg3[%c0_1, %c0_2] : memref<64x128xf32, #tpu.memory_space<vmem>>, vector<64x128xf32>
    %cst = arith.constant dense<0.000000e+00> : vector<8x128xf32>
    %2 = tpu.matmul %0, %1, %cst {dimension_numbers = #tpu.dot_dimension_numbers<[1], [0], [0], [1], [0, 0, 1, 1], [], []>} : vector<8x64xf32>, vector<64x128xf32>, vector<8x128xf32> -> vector<8x128xf32>
    %c0_3 = arith.constant 0 : index
    %c0_4 = arith.constant 0 : index
    %3 = vector.load %arg6[%c0_3, %c0_4] : memref<8x1xf32, #tpu.memory_space<vmem>>, vector<8x1xf32>
    %c0_5 = arith.constant 0 : index
    %c0_6 = arith.constant 0 : index
    %4 = vector.load %arg4[%c0_5, %c0_6] : memref<1x128xf32, #tpu.memory_space<vmem>>, vector<1x128xf32>
    %5 = vector.broadcast %3 : vector<8x1xf32> to vector<8x128xf32>
    %6 = vector.broadcast %4 : vector<1x128xf32> to vector<8x128xf32>
    %7 = arith.mulf %5, %6 : vector<8x128xf32>
    %8 = arith.mulf %2, %7 : vector<8x128xf32>
    %cst_7 = arith.constant -1.000000e+00 : f32
    %cst_8 = arith.constant 1.000000e+00 : f32
    %9 = vector.broadcast %cst_7 : f32 to vector<8x128xf32>
    %10 = arith.maximumf %9, %8 : vector<8x128xf32>
    %11 = vector.broadcast %cst_8 : f32 to vector<8x128xf32>
    %12 = arith.minimumf %11, %10 : vector<8x128xf32>
    %13 = arith.mulf %12, %12 : vector<8x128xf32>
    %cst_9 = arith.constant 8.000000e+00 : f32
    %14 = vector.broadcast %cst_9 : f32 to vector<8x128xf32>
    %15 = arith.mulf %14, %13 : vector<8x128xf32>
    %cst_10 = arith.constant 1.000000e+00 : f32
    %16 = vector.broadcast %cst_10 : f32 to vector<8x128xf32>
    %17 = arith.subf %13, %16 : vector<8x128xf32>
    %18 = arith.mulf %15, %17 : vector<8x128xf32>
    %cst_11 = arith.constant 1.000000e+00 : f32
    %19 = vector.broadcast %cst_11 : f32 to vector<8x128xf32>
    %20 = arith.addf %18, %19 : vector<8x128xf32>
    %cst_12 = arith.constant 0.707106769 : f32
    %21 = vector.broadcast %cst_12 : f32 to vector<8x128xf32>
    %22 = arith.cmpf ole, %12, %21 : vector<8x128xf32>
    %cst_13 = arith.constant 1.79489656E-9 : f32
    %23 = vector.broadcast %cst_13 : f32 to vector<8x128xf32>
    %24 = arith.cmpf ole, %12, %23 : vector<8x128xf32>
    %cst_14 = arith.constant -0.707106769 : f32
    %25 = vector.broadcast %cst_14 : f32 to vector<8x128xf32>
    %26 = arith.cmpf ole, %12, %25 : vector<8x128xf32>
    %cst_15 = arith.constant -1.000000e+00 : f32
    %27 = vector.broadcast %cst_15 : f32 to vector<8x128xf32>
    %28 = arith.cmpf ole, %12, %27 : vector<8x128xf32>
    %29 = arith.extui %22 : vector<8x128xi1> to vector<8x128xi32>
    %30 = arith.sitofp %29 : vector<8x128xi32> to vector<8x128xf32>
    %31 = arith.extui %24 : vector<8x128xi1> to vector<8x128xi32>
    %32 = arith.sitofp %31 : vector<8x128xi32> to vector<8x128xf32>
    %33 = arith.addf %30, %32 : vector<8x128xf32>
    %34 = arith.extui %26 : vector<8x128xi1> to vector<8x128xi32>
    %35 = arith.sitofp %34 : vector<8x128xi32> to vector<8x128xf32>
    %36 = arith.addf %33, %35 : vector<8x128xf32>
    %37 = arith.extui %28 : vector<8x128xi1> to vector<8x128xi32>
    %38 = arith.sitofp %37 : vector<8x128xi32> to vector<8x128xf32>
    %39 = arith.addf %36, %38 : vector<8x128xf32>
    %40 = arith.xori %22, %24 : vector<8x128xi1>
    %41 = arith.xori %26, %28 : vector<8x128xi1>
    %42 = arith.xori %40, %41 : vector<8x128xi1>
    %cst_16 = arith.constant -1.000000e+00 : f32
    %cst_17 = arith.constant 1.000000e+00 : f32
    %43 = vector.broadcast %cst_16 : f32 to vector<8x128xf32>
    %44 = vector.broadcast %cst_17 : f32 to vector<8x128xf32>
    %45 = arith.select %42, %43, %44 : vector<8x128xi1>, vector<8x128xf32>
    %46 = arith.mulf %45, %20 : vector<8x128xf32>
    %cst_18 = arith.constant 2.000000e+00 : f32
    %47 = vector.broadcast %cst_18 : f32 to vector<8x128xf32>
    %48 = arith.mulf %47, %39 : vector<8x128xf32>
    %49 = arith.subf %46, %48 : vector<8x128xf32>
    %c0_19 = arith.constant 0 : index
    %c0_20 = arith.constant 0 : index
    %50 = vector.load %arg5[%c0_19, %c0_20] : memref<8x1xf32, #tpu.memory_space<vmem>>, vector<8x1xf32>
    %51 = vector.broadcast %50 : vector<8x1xf32> to vector<8x128xf32>
    %52 = arith.mulf %12, %51 : vector<8x128xf32>
    %c0_21 = arith.constant 0 : index
    %c0_22 = arith.constant 0 : index
    %53 = vector.load %arg7[%c0_21, %c0_22] : memref<8x128xf32, #tpu.memory_space<vmem>>, vector<8x128xf32>
    tpu.vector_store %arg7[%c0_21, %c0_22], %52 {strides = array<i32>} : memref<8x128xf32, #tpu.memory_space<vmem>>, vector<8x128xf32>,
    %54 = vector.broadcast %50 : vector<8x1xf32> to vector<8x128xf32>
    %55 = arith.mulf %49, %54 : vector<8x128xf32>
    %c0_23 = arith.constant 0 : index
    %c0_24 = arith.constant 0 : index
    %56 = vector.load %arg8[%c0_23, %c0_24] : memref<8x128xf32, #tpu.memory_space<vmem>>, vector<8x128xf32>
    tpu.vector_store %arg8[%c0_23, %c0_24], %55 {strides = array<i32>} : memref<8x128xf32, #tpu.memory_space<vmem>>, vector<8x128xf32>,
    return
  }
  func.func @transform_0(%arg0: i32, %arg1: i32) -> (i32, i32) {
    %c0_i32 = arith.constant 0 : i32
    %c0_i32_0 = arith.constant 0 : i32
    return %arg1, %c0_i32 : i32, i32
  }
  func.func @transform_1(%arg0: i32, %arg1: i32) -> (i32, i32) {
    %c0_i32 = arith.constant 0 : i32
    %c0_i32_0 = arith.constant 0 : i32
    return %c0_i32, %arg0 : i32, i32
  }
  func.func @transform_2(%arg0: i32, %arg1: i32) -> (i32, i32) {
    %c0_i32 = arith.constant 0 : i32
    %c0_i32_0 = arith.constant 0 : i32
    return %c0_i32, %arg0 : i32, i32
  }
  func.func @transform_3(%arg0: i32, %arg1: i32) -> (i32, i32) {
    %c0_i32 = arith.constant 0 : i32
    %c0_i32_0 = arith.constant 0 : i32
    return %arg1, %c0_i32 : i32, i32
  }
  func.func @transform_4(%arg0: i32, %arg1: i32) -> (i32, i32) {
    %c0_i32 = arith.constant 0 : i32
    %c0_i32_0 = arith.constant 0 : i32
    return %arg1, %c0_i32 : i32, i32
  }
  func.func @transform_5(%arg0: i32, %arg1: i32) -> (i32, i32) {
    %c0_i32 = arith.constant 0 : i32
    return %arg1, %arg0 : i32, i32
  }
  func.func @transform_6(%arg0: i32, %arg1: i32) -> (i32, i32) {
    %c0_i32 = arith.constant 0 : i32
    return %arg1, %arg0 : i32, i32
  }
}

</mosaic_0001>

<llo_original>
// kernel: tpu_custom_call.1
$region0: #{tpu_custom_call.1}
  #allocation0 [shape = 'u32[]', space=smem, size = 0x4, offset = 0x4, fixed_abs, tag = 'smem constant byte address 0x4 - core index']
  #allocation1 [shape = 'u32[144,128]{1,0:T(1,128)}', space=vmem, size = 0x12000, scoped, tag = 'internal scratch']
  %s0 = inlined_call_operand.vmem [shape: f32[16,64], index: 0, kind: input, shape index: {}]
  %s1 = inlined_call_operand.hbm [shape: f32[64,384], index: 1, kind: input, shape index: {}]
  %s2 = inlined_call_operand.vmem [shape: f32[1,384], index: 2, kind: input, shape index: {}]
  %s3 = inlined_call_operand.vmem [shape: f32[16,1], index: 3, kind: input, shape index: {}]
  %s4 = inlined_call_operand.vmem [shape: f32[16,1], index: 4, kind: input, shape index: {}]
  %s5 = inlined_call_operand.hbm [shape: f32[16,384], index: 5, kind: output, shape index: {0}]
  %s6 = inlined_call_operand.hbm [shape: f32[16,384], index: 6, kind: output, shape index: {1}]
  %7 = xla_tuple %s5, %s6
  %s8 = sld [smem:[#allocation0]]
  $region65: #{tpu_custom_call.1} parent=0
    _
  %s10 = ssub.s32 1, %s8
  %s11 = scalar_select 0, %s10, %s8
  $region1: #{tpu_custom_call.1} parent=0
    #allocation2 [shape = 'u8[65536]{0}', space=vmem, size = 0x10000, scoped, tag = 'input window, operand 1']
    #allocation3 [shape = 's32[2]{0}', space=sflag, size = 0x8, scoped, tag = 'scoped memory for tpu_custom_call.1']
    #allocation4 [shape = 's32[2]{0}', space=sflag, size = 0x8, scoped, tag = 'scoped memory for tpu_custom_call.1']
    #allocation5 [shape = 'u8[8192]{0}', space=vmem, size = 0x2000, scoped, tag = 'output window, operand 0']
    #allocation6 [shape = 'u8[8192]{0}', space=vmem, size = 0x2000, scoped, tag = 'output window, operand 1']
    #allocation7 [shape = 's32[2]{0}', space=sflag, size = 0x8, scoped, tag = 'scoped memory for tpu_custom_call.1']
    %12 = vsyncpa [#allocation3], 0
    %s13 = scalar_lea.sflag [#allocation3], 1
    %14 = vsyncpa %s13, 0
    %15 = vsyncpa [#allocation4], 0
    %s16 = scalar_lea.sflag [#allocation4], 1
    %17 = vsyncpa %s16, 0
    %18 = vsyncpa [#allocation7], 0
    %s19 = scalar_lea.sflag [#allocation7], 1
    %20 = vsyncpa %s19, 0
    loop: start=0, step=1, limit=8
    $region2: #{tpu_custom_call.1} parent=1 // loop_pre_header
      _
    $region3: #{tpu_custom_call.1} parent=1 // loop_header
      %s22 = sphi 0, %s26
      %p23 = scmp.ge.s32.totalorder %s22, 8
      %s29 = sphi 0, %s41
      %s30 = sphi 0, %s37
      %s31 = sphi 0, %s29
      %s32 = sphi 0, %s30
      %s33 = sphi 0, %s31
      %s34 = sphi 0, %s32
      %s44 = sphi 0, %s46
      %s47 = sphi 0, %s44
      %s48 = sphi 0, %s47
      %s64 = sphi 0, %s48
      %s70 = sphi 0, %s72
      %s73 = sphi 0, %s70
      %s74 = sphi 0, %s73
      %s90 = sphi 0, %s74
      %s96 = sphi 0, %s98
      %s99 = sphi 0, %s96
      %s100 = sphi 0, %s99
      %s116 = sphi 0, %s100
      %s122 = sphi 0, %s124
      %s125 = sphi 0, %s122
      %s126 = sphi 0, %s125
      %s142 = sphi 0, %s126
      %s148 = sphi 0, %s150
      %s151 = sphi 0, %s148
      %s152 = sphi 0, %s151
      %s168 = sphi 0, %s152
      %s176 = sphi 0, %s178
      %s179 = sphi 0, %s176
      %s180 = sphi 0, %s179
      %s196 = sphi 0, %s180
      %s204 = sphi 0, %s206
      %s207 = sphi 0, %s204
      %s208 = sphi 0, %s207
      %s224 = sphi 0, %s208
    $region4: #{tpu_custom_call.1} parent=1 // loop_header_branch
      %25 = sbr.rel (%p23) target = $region8
    $region5: #{tpu_custom_call.1} parent=1 // loop_body
      %s27 = ssub.s32 %s22, 1
      %s28 = ssub.s32 %s22, 2
      %s35 = sadd.s32 1, %s30
      %p36 = scmp.ge.s32.totalorder %s35, 2
      %s37 = scalar_select %p36, 0, %s35
      %s38 = sadd.s32 1, %s29
      %s39 = scalar_select %p36, %s38, %s29
      %p40 = scmp.ge.s32.totalorder %s39, 3
      %s41 = scalar_select %p40, 0, %s39
      %s42 = ssub.s32 %s30, %s37
      %p43 = scmp.eq.s32.totalorder %s42, 0
      %s45 = sadd.s32 %s44, 1
      %s46 = scalar_select %p43, %s44, %s45
      %p49 = pneg %p43
      %p50 = scmp.eq.s32.totalorder %s22, 5
      %p51 = por %p49, %p50
      %p52 = scmp.ne.s32.totalorder %s44, %s47
      %p53 = scmp.eq.s32.totalorder %s22, 0
      %p54 = por %p52, %p53
      %p55 = scmp.ne.s32.totalorder %s44, %s47
      %p56 = scmp.eq.s32.totalorder %s27, 5
      %p57 = por %p55, %p56
      %p58 = scmp.ne.s32.totalorder %s47, %s48
      %p59 = scmp.eq.s32.totalorder %s27, 0
      %p60 = por %p58, %p59
      %p61 = scmp.ne.s32.totalorder %s47, %s48
      %p62 = scmp.eq.s32.totalorder %s28, 5
      %p63 = por %p61, %p62
      %p65 = scmp.ne.s32.totalorder %s48, %s64
      %p66 = scmp.eq.s32.totalorder %s28, 0
      %p67 = por %p65, %p66
      %s68 = ssub.s32 %s29, %s41
      %p69 = scmp.eq.s32.totalorder %s68, 0
      %s71 = sadd.s32 %s70, 1
      %s72 = scalar_select %p69, %s70, %s71
      %p75 = pneg %p69
      %p76 = scmp.eq.s32.totalorder %s22, 5
      %p77 = por %p75, %p76
      %p78 = scmp.ne.s32.totalorder %s70, %s73
      %p79 = scmp.eq.s32.totalorder %s22, 0
      %p80 = por %p78, %p79
      %p81 = scmp.ne.s32.totalorder %s70, %s73
      %p82 = scmp.eq.s32.totalorder %s27, 5
      %p83 = por %p81, %p82
      %p84 = scmp.ne.s32.totalorder %s73, %s74
      %p85 = scmp.eq.s32.totalorder %s27, 0
      %p86 = por %p84, %p85
      %p87 = scmp.ne.s32.totalorder %s73, %s74
      %p88 = scmp.eq.s32.totalorder %s28, 5
      %p89 = por %p87, %p88
      %p91 = scmp.ne.s32.totalorder %s74, %s90
      %p92 = scmp.eq.s32.totalorder %s28, 0
      %p93 = por %p91, %p92
      %s94 = ssub.s32 %s29, %s41
      %p95 = scmp.eq.s32.totalorder %s94, 0
      %s97 = sadd.s32 %s96, 1
      %s98 = scalar_select %p95, %s96, %s97
      %p101 = pneg %p95
      %p102 = scmp.eq.s32.totalorder %s22, 5
      %p103 = por %p101, %p102
      %p104 = scmp.ne.s32.totalorder %s96, %s99
      %p105 = scmp.eq.s32.totalorder %s22, 0
      %p106 = por %p104, %p105
      %p107 = scmp.ne.s32.totalorder %s96, %s99
      %p108 = scmp.eq.s32.totalorder %s27, 5
      %p109 = por %p107, %p108
      %p110 = scmp.ne.s32.totalorder %s99, %s100
      %p111 = scmp.eq.s32.totalorder %s27, 0
      %p112 = por %p110, %p111
      %p113 = scmp.ne.s32.totalorder %s99, %s100
      %p114 = scmp.eq.s32.totalorder %s28, 5
      %p115 = por %p113, %p114
      %p117 = scmp.ne.s32.totalorder %s100, %s116
      %p118 = scmp.eq.s32.totalorder %s28, 0
      %p119 = por %p117, %p118
      %s120 = ssub.s32 %s30, %s37
      %p121 = scmp.eq.s32.totalorder %s120, 0
      %s123 = sadd.s32 %s122, 1
      %s124 = scalar_select %p121, %s122, %s123
      %p127 = pneg %p121
      %p128 = scmp.eq.s32.totalorder %s22, 5
      %p129 = por %p127, %p128
      %p130 = scmp.ne.s32.totalorder %s122, %s125
      %p131 = scmp.eq.s32.totalorder %s22, 0
      %p132 = por %p130, %p131
      %p133 = scmp.ne.s32.totalorder %s122, %s125
      %p134 = scmp.eq.s32.totalorder %s27, 5
      %p135 = por %p133, %p134
      %p136 = scmp.ne.s32.totalorder %s125, %s126
      %p137 = scmp.eq.s32.totalorder %s27, 0
      %p138 = por %p136, %p137
      %p139 = scmp.ne.s32.totalorder %s125, %s126
      %p140 = scmp.eq.s32.totalorder %s28, 5
      %p141 = por %p139, %p140
      %p143 = scmp.ne.s32.totalorder %s126, %s142
      %p144 = scmp.eq.s32.totalorder %s28, 0
      %p145 = por %p143, %p144
      %s146 = ssub.s32 %s30, %s37
      %p147 = scmp.eq.s32.totalorder %s146, 0
      %s149 = sadd.s32 %s148, 1
      %s150 = scalar_select %p147, %s148, %s149
      %p153 = pneg %p147
      %p154 = scmp.eq.s32.totalorder %s22, 5
      %p155 = por %p153, %p154
      %p156 = scmp.ne.s32.totalorder %s148, %s151
      %p157 = scmp.eq.s32.totalorder %s22, 0
      %p158 = por %p156, %p157
      %p159 = scmp.ne.s32.totalorder %s148, %s151
      %p160 = scmp.eq.s32.totalorder %s27, 5
      %p161 = por %p159, %p160
      %p162 = scmp.ne.s32.totalorder %s151, %s152
      %p163 = scmp.eq.s32.totalorder %s27, 0
      %p164 = por %p162, %p163
      %p165 = scmp.ne.s32.totalorder %s151, %s152
      %p166 = scmp.eq.s32.totalorder %s28, 5
      %p167 = por %p165, %p166
      %p169 = scmp.ne.s32.totalorder %s152, %s168
      %p170 = scmp.eq.s32.totalorder %s28, 0
      %p171 = por %p169, %p170
      %s172 = ssub.s32 %s30, %s37
      %s173 = ssub.s32 %s29, %s41
      %s174 = sor.u32 %s172, %s173
      %p175 = scmp.eq.s32.totalorder %s174, 0
      %s177 = sadd.s32 %s176, 1
      %s178 = scalar_select %p175, %s176, %s177
      %p181 = pneg %p175
      %p182 = scmp.eq.s32.totalorder %s22, 5
      %p183 = por %p181, %p182
      %p184 = scmp.ne.s32.totalorder %s176, %s179
      %p185 = scmp.eq.s32.totalorder %s22, 0
      %p186 = por %p184, %p185
      %p187 = scmp.ne.s32.totalorder %s176, %s179
      %p188 = scmp.eq.s32.totalorder %s27, 5
      %p189 = por %p187, %p188
      %p190 = scmp.ne.s32.totalorder %s179, %s180
      %p191 = scmp.eq.s32.totalorder %s27, 0
      %p192 = por %p190, %p191
      %p193 = scmp.ne.s32.totalorder %s179, %s180
      %p194 = scmp.eq.s32.totalorder %s28, 5
      %p195 = por %p193, %p194
      %p197 = scmp.ne.s32.totalorder %s180, %s196
      %p198 = scmp.eq.s32.totalorder %s28, 0
      %p199 = por %p197, %p198
      %s200 = ssub.s32 %s30, %s37
      %s201 = ssub.s32 %s29, %s41
      %s202 = sor.u32 %s200, %s201
      %p203 = scmp.eq.s32.totalorder %s202, 0
      %s205 = sadd.s32 %s204, 1
      %s206 = scalar_select %p203, %s204, %s205
      %p209 = pneg %p203
      %p210 = scmp.eq.s32.totalorder %s22, 5
      %p211 = por %p209, %p210
      %p212 = scmp.ne.s32.totalorder %s204, %s207
      %p213 = scmp.eq.s32.totalorder %s22, 0
      %p214 = por %p212, %p213
      %p215 = scmp.ne.s32.totalorder %s204, %s207
      %p216 = scmp.eq.s32.totalorder %s27, 5
      %p217 = por %p215, %p216
      %p218 = scmp.ne.s32.totalorder %s207, %s208
      %p219 = scmp.eq.s32.totalorder %s27, 0
      %p220 = por %p218, %p219
      %p221 = scmp.ne.s32.totalorder %s207, %s208
      %p222 = scmp.eq.s32.totalorder %s28, 5
      %p223 = por %p221, %p222
      %p225 = scmp.ne.s32.totalorder %s208, %s224
      %p226 = scmp.eq.s32.totalorder %s28, 0
      %p227 = por %p225, %p226
      %p228 = scmp.le.s32.totalorder 1, %s22
      %p229 = scmp.lt.s32.totalorder %s22, 7
      %p230 = pnand %p228, %p229
      %p231 = pneg %p230
      // Predicated region
      $region9: #{tpu_custom_call.1} parent=5 // pred_check
        _
      $region10: #{tpu_custom_call.1} parent=5 // pred_check_branch
        %233 = sbr.rel (%p230) target = $region12
      $region11: #{tpu_custom_call.1} parent=5 // pred_region
        %s234 = ssub.s32 %s22, 1
      $region12: #{tpu_custom_call.1} parent=5 // pred_fallthru
        _
      %p235 = scmp.lt.s32.totalorder %s22, 6
      // Predicated region
      $region13: #{tpu_custom_call.1} parent=5 // pred_check
        %p236 = pneg %p235
      $region14: #{tpu_custom_call.1} parent=5 // pred_check_branch
        %238 = sbr.rel (%p236) target = $region16
      $region15: #{tpu_custom_call.1} parent=5 // pred_region
        // Predicated region
        $region17: #{tpu_custom_call.1} parent=15 // pred_check
          %p239 = pneg %p54
        $region18: #{tpu_custom_call.1} parent=15 // pred_check_branch
          %241 = sbr.rel (%p239) target = $region20
        $region19: #{tpu_custom_call.1} parent=15 // pred_region
          %p242 = scmp.lt.s32.totalorder %s30, 1
          %s243 = scalar_select %p242, %s30, 1
          %s244 = smul.addr %s243, 8
          %s245 = scalar_lea.vmem %s0, %s244
        $region20: #{tpu_custom_call.1} parent=15 // pred_fallthru
          _
        // Predicated region
        $region21: #{tpu_custom_call.1} parent=15 // pred_check
          %p246 = pneg %p80
        $region22: #{tpu_custom_call.1} parent=15 // pred_check_branch
          %248 = sbr.rel (%p246) target = $region24
        $region23: #{tpu_custom_call.1} parent=15 // pred_region
          %s249 = sand.u32 %s70, 1
          %s250 = scalar_lea.sflag [#allocation3], %s249
          %s251 = sand.u32 %s70, 1
          %s252 = smul.addr %s251, 64
          %s253 = scalar_lea.vmem [#allocation2], %s252
          %s255 = ssub.s32 1024, 1024
          %256 = vsyncadd %s250, %s255
          %s257 = smul.addr %s29, 128
          %s258 = scalar_lea.hbm %s1, %s257
          %s259 = sshll.u32 %s253, 4
          %s260 = int_to_ptr.vmem [resolvable:$true] %s259
          %265 = dma.hbm_to_vmem [thread:$0]  %s258, 1024, %s260, %s250, 384, 128, 8
        $region24: #{tpu_custom_call.1} parent=15 // pred_fallthru
          _
        // Predicated region
        $region25: #{tpu_custom_call.1} parent=15 // pred_check
          %p266 = pneg %p106
        $region26: #{tpu_custom_call.1} parent=15 // pred_check_branch
          %268 = sbr.rel (%p266) target = $region28
        $region27: #{tpu_custom_call.1} parent=15 // pred_region
          %p269 = scmp.lt.s32.totalorder %s29, 2
          %s270 = scalar_select %p269, %s29, 2
          %s271 = scalar_lea.vmem %s2, %s270
        $region28: #{tpu_custom_call.1} parent=15 // pred_fallthru
          _
        // Predicated region
        $region29: #{tpu_custom_call.1} parent=15 // pred_check
          %p272 = pneg %p132
        $region30: #{tpu_custom_call.1} parent=15 // pred_check_branch
          %274 = sbr.rel (%p272) target = $region32
        $region31: #{tpu_custom_call.1} parent=15 // pred_region
          %p275 = scmp.lt.s32.totalorder %s30, 1
          %s276 = scalar_select %p275, %s30, 1
          %s277 = smul.addr %s276, 8
          %s278 = scalar_lea.vmem %s3, %s277
        $region32: #{tpu_custom_call.1} parent=15 // pred_fallthru
          _
        // Predicated region
        $region33: #{tpu_custom_call.1} parent=15 // pred_check
          %p279 = pneg %p158
        $region34: #{tpu_custom_call.1} parent=15 // pred_check_branch
          %281 = sbr.rel (%p279) target = $region36
        $region35: #{tpu_custom_call.1} parent=15 // pred_region
          %p282 = scmp.lt.s32.totalorder %s30, 1
          %s283 = scalar_select %p282, %s30, 1
          %s284 = smul.addr %s283, 8
          %s285 = scalar_lea.vmem %s4, %s284
        $region36: #{tpu_custom_call.1} parent=15 // pred_fallthru
          _
      $region16: #{tpu_custom_call.1} parent=5 // pred_fallthru
        _
      %p286 = scmp.le.s32.totalorder 1, %s22
      %p287 = scmp.lt.s32.totalorder %s22, 7
      %p288 = pnand %p286, %p287
      %p289 = pneg %p288
      // Predicated region
      $region37: #{tpu_custom_call.1} parent=5 // pred_check
        _
      $region38: #{tpu_custom_call.1} parent=5 // pred_check_branch
        %291 = sbr.rel (%p288) target = $region40
      $region39: #{tpu_custom_call.1} parent=5 // pred_region
        %s292 = ssub.s32 %s22, 1
        %s293 = sand.u32 %s73, 1
        %s294 = scalar_lea.sflag [#allocation3], %s293
        %s295 = sand.u32 %s73, 1
        %s296 = smul.addr %s295, 64
        %s297 = scalar_lea.vmem [#allocation2], %s296
        // Predicated region
        $region41: #{tpu_custom_call.1} parent=39 // pred_check
          %p298 = pneg %p86
        $region42: #{tpu_custom_call.1} parent=39 // pred_check_branch
          %300 = sbr.rel (%p298) target = $region44
        $region43: #{tpu_custom_call.1} parent=39 // pred_region
          %301 = dma.done %s294, 1024
        $region44: #{tpu_custom_call.1} parent=39 // pred_fallthru
          _
        %p302 = scmp.lt.s32.totalorder %s32, 1
        %s303 = scalar_select %p302, %s32, 1
        %s304 = smul.addr %s303, 8
        %s305 = scalar_lea.vmem %s0, %s304
        %p306 = pneg %p60
        %p307 = pneg %p57
        %s308 = sand.u32 %s73, 1
        %s309 = scalar_lea.sflag [#allocation3], %s308
        %s310 = sand.u32 %s73, 1
        %s311 = smul.addr %s310, 64
        %s312 = scalar_lea.vmem [#allocation2], %s311
        %p313 = pneg %p86
        %p314 = pneg %p83
        %p315 = scmp.lt.s32.totalorder %s31, 2
        %s316 = scalar_select %p315, %s31, 2
        %s317 = scalar_lea.vmem %s2, %s316
        %p318 = pneg %p112
        %p319 = pneg %p109
        %p320 = scmp.lt.s32.totalorder %s32, 1
        %s321 = scalar_select %p320, %s32, 1
        %s322 = smul.addr %s321, 8
        %s323 = scalar_lea.vmem %s3, %s322
        %p324 = pneg %p138
        %p325 = pneg %p135
        %p326 = scmp.lt.s32.totalorder %s32, 1
        %s327 = scalar_select %p326, %s32, 1
        %s328 = smul.addr %s327, 8
        %s329 = scalar_lea.vmem %s4, %s328
        %p330 = pneg %p164
        %p331 = pneg %p161
        %p332 = pneg %p192
        %p333 = pneg %p189
        %s334 = sand.u32 %s179, 1
        %s335 = scalar_lea.sflag [#allocation4], %s334
        %s336 = sand.u32 %s179, 1
        %s337 = smul.addr %s336, 8
        %s338 = scalar_lea.vmem [#allocation5], %s337
        %p339 = pneg %p220
        %p340 = pneg %p217
        %s341 = sand.u32 %s207, 1
        %s342 = scalar_lea.sflag [#allocation7], %s341
        %s343 = sand.u32 %s207, 1
        %s344 = smul.addr %s343, 8
        %s345 = scalar_lea.vmem [#allocation6], %s344
        %p346 = scmp.lt.s32.totalorder %s32, 1
        %s347 = scalar_select %p346, %s32, 1
        %s348 = smul.addr %s347, 8
        %s349 = scalar_lea.vmem %s0, %s348
        %p350 = scmp.lt.s32.totalorder %s31, 2
        %s351 = scalar_select %p350, %s31, 2
        %s352 = scalar_lea.vmem %s2, %s351
        %p353 = scmp.lt.s32.totalorder %s32, 1
        %s354 = scalar_select %p353, %s32, 1
        %s355 = smul.addr %s354, 8
        %s356 = scalar_lea.vmem %s3, %s355
        %p357 = scmp.lt.s32.totalorder %s32, 1
        %s358 = scalar_select %p357, %s32, 1
        %s359 = smul.addr %s358, 8
        %s360 = scalar_lea.vmem %s4, %s359
        %v361 = vld [vmem:[%s349] sm:$0xff]
        %v362 = vld [vmem:[%s297] sm:$0xff]
        %v363 = vld [vmem:[%s297 + $0x8] sm:$0xff]
        %v364 = vld [vmem:[%s297 + $0x10] sm:$0xff]
        %v365 = vld [vmem:[%s297 + $0x18] sm:$0xff]
        %v366 = vld [vmem:[%s297 + $0x20] sm:$0xff]
        %v367 = vld [vmem:[%s297 + $0x28] sm:$0xff]
        %v368 = vld [vmem:[%s297 + $0x30] sm:$0xff]
        %v369 = vld [vmem:[%s297 + $0x38] sm:$0xff]
        %vm370 = vcmask 523264
        %v372 = vsel %vm370, %v361, 0
        %374 = vmatprep.subr.mxu0 0.0
        %375 = vmatpush1.msra.mxu0 %v362
        %376 = vmatprep.subr.mxu0 0.0
        %377 = vmatpush1.msra.mxu0 %v363
        %378 = vmatprep.subr.mxu0 0.0
        %379 = vmatpush1.msra.mxu0 %v364
        %380 = vmatprep.subr.mxu0 0.0
        %381 = vmatpush1.msra.mxu0 %v365
        %382 = vmatprep.subr.mxu0 0.0
        %383 = vmatpush1.msra.mxu0 %v366
        %384 = vmatprep.subr.mxu0 0.0
        %385 = vmatpush1.msra.mxu0 %v367
        %386 = vmatprep.subr.mxu0 0.0
        %387 = vmatpush1.msra.mxu0 %v368
        %388 = vmatprep.subr.mxu0 0.0
        %389 = vmatpush1.msra.mxu0 %v369
        %390 = vmatprep.subr.mxu0 0.0
        %391 = vmatpush1.msra.mxu0 0.0
        %392 = vmatprep.subr.mxu0 0.0
        %393 = vmatpush1.msra.mxu0 0.0
        %394 = vmatprep.subr.mxu0 0.0
        %395 = vmatpush1.msra.mxu0 0.0
        %396 = vmatprep.subr.mxu0 0.0
        %397 = vmatpush1.msra.mxu0 0.0
        %398 = vmatprep.subr.mxu0 0.0
        %399 = vmatpush1.msra.mxu0 0.0
        %400 = vmatprep.subr.mxu0 0.0
        %401 = vmatpush1.msra.mxu0 0.0
        %402 = vmatprep.subr.mxu0 0.0
        %403 = vmatpush1.msra.mxu0 0.0
        %404 = vmatprep.subr.mxu0 0.0
        %405 = vmatpush1.msra.mxu0 0.0
        %406 = vmatprep.subr.mxu0 0.0
        %407 = vmatpush1.msra.mxu0 0.0
        %408 = vmatprep.subr.mxu0 0.0
        %409 = vmatpush1.msra.mxu0 0.0
        %410 = vmatprep.subr.mxu0 0.0
        %411 = vmatpush1.msra.mxu0 0.0
        %412 = vmatprep.subr.mxu0 0.0
        %413 = vmatpush1.msra.mxu0 0.0
        %414 = vmatprep.subr.mxu0 0.0
        %415 = vmatpush1.msra.mxu0 0.0
        %416 = vmatprep.subr.mxu0 0.0
        %417 = vmatpush1.msra.mxu0 0.0
        %418 = vmatprep.subr.mxu0 0.0
        %419 = vmatpush1.msra.mxu0 0.0
        %420 = vmatprep.subr.mxu0 0.0
        %421 = vmatpush1.msra.mxu0 0.0
        %422 = vmatprep.subr.mxu0 0.0
        %423 = vmatpush1.msra.mxu0 0.0
        %424 = vmatprep.subr.mxu0 0.0
        %425 = vmatpush1.msra.mxu0 0.0
        %426 = vmatprep.subr.mxu0 0.0
        %427 = vmatpush1.msra.mxu0 0.0
        %428 = vmatprep.subr.mxu0 0.0
        %429 = vmatpush1.msra.mxu0 0.0
        %430 = vmatprep.subr.mxu0 0.0
        %431 = vmatpush1.msra.mxu0 0.0
        %432 = vmatprep.subr.mxu0 0.0
        %433 = vmatpush1.msra.mxu0 0.0
        %434 = vmatprep.subr.mxu0 0.0
        %435 = vmatpush1.msra.mxu0 0.0
        %436 = vmatprep.subr.mxu0 0.0
        %437 = vmatpush1.msra.mxu0 0.0
        %438 = vmatprep.mubr.f32.mxu0 0.0
        %439 = vmatmul.mubr.f32.gmra.mrb[0].mxu0 %v372
        %v440 = vpop.f32.mrb[0].mxu0
        %v441 = vadd.f32 0.0, %v440
        %v442 = vpop.f32.mrb[0].mxu0
        %443 = vdwg.mxu0
        %v444 = vld [vmem:[%s360] sm:$0xff]
        %v445 = vld [vmem:[%s352] sm:$0x1]
        %447 = vset.pattern.permute.xlu0 0
        %448 = vperm.xlu0 %447, %v444
        %v449 = vpop.permute.xlu0 %448
        %v452 = vlaneseq
        %v453 = vshrl.u32 %v452, 7
        %v454 = vsub.s32 0, %v453
        %v455 = vrot.slane %v445, %v454
        %v457 = vmul.f32 %v449, %v455
        %v458 = vmul.f32 %v441, %v457
        %v459 = vmax.f32 %v458, -1.0
        %v460 = vmin.f32 %v459, 1.0
        %v461 = vmul.f32 %v460, %v460
        %v462 = vmul.f32 %v461, 8.0
        %v463 = vsub.f32 %v461, 1.0
        %v464 = vmul.f32 %v462, %v463
        %v465 = vadd.f32 %v464, 1.0
        %vm466 = vcmp.le.f32.partialorder %v460, 0.70710677
        %vm467 = vcmp.le.f32.partialorder %v460, 1.7948966e-09
        %vm468 = vcmp.le.f32.partialorder %v460, -0.70710677
        %vm469 = vcmp.le.f32.partialorder %v460, -1.0
        %v470 = vsel %vm466, 1, 0
        %v471 = vcvt.s32.f32 %v470
        %v472 = vsel %vm467, 1, 0
        %v473 = vcvt.s32.f32 %v472
        %v474 = vadd.f32 %v471, %v473
        %v475 = vsel %vm468, 1, 0
        %v476 = vcvt.s32.f32 %v475
        %v477 = vadd.f32 %v474, %v476
        %v478 = vsel %vm469, 1, 0
        %v479 = vcvt.s32.f32 %v478
        %v480 = vadd.f32 %v477, %v479
        %vm481 = vmxor %vm466, %vm467
        %vm482 = vmxor %vm468, %vm469
        %vm483 = vmxor %vm481, %vm482
        %v484 = vsel %vm483, -1.0, 1.0
        %v485 = vmul.f32 %v484, %v465
        %v486 = vmul.f32 %v480, 2.0
        %v487 = vsub.f32 %v485, %v486
        %v488 = vld [vmem:[%s356] sm:$0xff]
        %490 = vset.pattern.permute.xlu0 0
        %491 = vperm.xlu0 %490, %v488
        %v492 = vpop.permute.xlu0 %491
        %v494 = vmul.f32 %v460, %v492
        %495 = vst [vmem:[%s338] sm:$0xff] %v494
        %v496 = vmul.f32 %v487, %v492
        %497 = vst [vmem:[%s345] sm:$0xff] %v496
        %s498 = sand.u32 %s179, 1
        %s499 = scalar_lea.sflag [#allocation4], %s498
        %s500 = sand.u32 %s179, 1
        %s501 = smul.addr %s500, 8
        %s502 = scalar_lea.vmem [#allocation5], %s501
        %s503 = sand.u32 %s207, 1
        %s504 = scalar_lea.sflag [#allocation7], %s503
        %s505 = sand.u32 %s207, 1
        %s506 = smul.addr %s505, 8
        %s507 = scalar_lea.vmem [#allocation6], %s506
        // Predicated region
        $region45: #{tpu_custom_call.1} parent=39 // pred_check
          %p508 = pneg %p189
        $region46: #{tpu_custom_call.1} parent=39 // pred_check_branch
          %510 = sbr.rel (%p508) target = $region48
        $region47: #{tpu_custom_call.1} parent=39 // pred_region
          %s512 = ssub.s32 128, 128
          %513 = vsyncadd %s499, %s512
          %s514 = smul.addr %s32, 3
          %s515 = sadd.s32 %s31, %s514
          %s516 = smul.addr %s515, 128
          %s517 = scalar_lea.hbm %s5, %s516
          %s519 = sshll.u32 %s502, 4
          %s520 = int_to_ptr.vmem [resolvable:$true] %s519
          %522 = dma.vmem_to_hbm [thread:$0]  %s520, 128, %s517, %s499
        $region48: #{tpu_custom_call.1} parent=39 // pred_fallthru
          _
        // Predicated region
        $region49: #{tpu_custom_call.1} parent=39 // pred_check
          %p523 = pneg %p217
        $region50: #{tpu_custom_call.1} parent=39 // pred_check_branch
          %525 = sbr.rel (%p523) target = $region52
        $region51: #{tpu_custom_call.1} parent=39 // pred_region
          %s527 = ssub.s32 128, 128
          %528 = vsyncadd %s504, %s527
          %s529 = smul.addr %s32, 3
          %s530 = sadd.s32 %s31, %s529
          %s531 = smul.addr %s530, 128
          %s532 = scalar_lea.hbm %s6, %s531
          %s534 = sshll.u32 %s507, 4
          %s535 = int_to_ptr.vmem [resolvable:$true] %s534
          %537 = dma.vmem_to_hbm [thread:$0]  %s535, 128, %s532, %s504
        $region52: #{tpu_custom_call.1} parent=39 // pred_fallthru
          _
      $region40: #{tpu_custom_call.1} parent=5 // pred_fallthru
        _
      %p538 = scmp.le.s32.totalorder 2, %s22
      // Predicated region
      $region53: #{tpu_custom_call.1} parent=5 // pred_check
        %p539 = pneg %p538
      $region54: #{tpu_custom_call.1} parent=5 // pred_check_branch
        %541 = sbr.rel (%p539) target = $region56
      $region55: #{tpu_custom_call.1} parent=5 // pred_region
        %s542 = ssub.s32 %s22, 2
        // Predicated region
        $region57: #{tpu_custom_call.1} parent=55 // pred_check
          %p543 = pneg %p195
        $region58: #{tpu_custom_call.1} parent=55 // pred_check_branch
          %545 = sbr.rel (%p543) target = $region60
        $region59: #{tpu_custom_call.1} parent=55 // pred_region
          %s546 = sand.u32 %s180, 1
          %s547 = scalar_lea.sflag [#allocation4], %s546
          %s548 = sand.u32 %s180, 1
          %s549 = smul.addr %s548, 8
          %s550 = scalar_lea.vmem [#allocation5], %s549
          %551 = dma.done %s547, 128
        $region60: #{tpu_custom_call.1} parent=55 // pred_fallthru
          _
        // Predicated region
        $region61: #{tpu_custom_call.1} parent=55 // pred_check
          %p552 = pneg %p223
        $region62: #{tpu_custom_call.1} parent=55 // pred_check_branch
          %554 = sbr.rel (%p552) target = $region64
        $region63: #{tpu_custom_call.1} parent=55 // pred_region
          %s555 = sand.u32 %s208, 1
          %s556 = scalar_lea.sflag [#allocation7], %s555
          %s557 = sand.u32 %s208, 1
          %s558 = smul.addr %s557, 8
          %s559 = scalar_lea.vmem [#allocation6], %s558
          %560 = dma.done %s556, 128
        $region64: #{tpu_custom_call.1} parent=55 // pred_fallthru
          _
      $region56: #{tpu_custom_call.1} parent=5 // pred_fallthru
        _
    $region6: #{tpu_custom_call.1} parent=1 // loop_footer
      %s26 = sadd.s32 1, %s22
    $region7: #{tpu_custom_call.1} parent=1 // loop_footer_branch
      %21 = sbr.rel target = $region3
    $region8: #{tpu_custom_call.1} parent=1 // loop_exit
      _
    %561 = vsyncpa [#allocation3], 1
    %s562 = scalar_lea.sflag [#allocation3], 1
    %563 = vsyncpa %s562, 1
    %564 = vsyncpa [#allocation4], 1
    %s565 = scalar_lea.sflag [#allocation4], 1
    %566 = vsyncpa %s565, 1
    %567 = vsyncpa [#allocation7], 1
    %s568 = scalar_lea.sflag [#allocation7], 1
    %569 = vsyncpa %s568, 1

</llo_original>
